<compile_context>
chip_gen: v5e
topology: v5e:2x2
jax: 0.10.0
libtpu: 0.0.40
codegen_flags: <defaults>
</compile_context>

<pallas_src>
import functools

import jax
import jax.numpy as jnp
from jax.experimental import pallas as pl
from jax.experimental.pallas import tpu as pltpu


def _round_up(x, m):
    return (x + m - 1) // m * m


def _vmem_capacity_bytes(default=64 * 1024 * 1024):
    """Physical VMEM of the local chip; conservative 64 MiB fallback."""
    try:
        info = pltpu.get_tpu_info()
        cap = getattr(info, "vmem_capacity_bytes", None)
        if cap:
            return int(cap)
    except Exception:
        pass
    return default


def mlp_kernel(x_ref, w1_ref, b1_ref, w2_ref, b2_ref, o_ref, *, inv_hw):
    # x_ref: (TB, C, HW) float32.  Global average pool over the spatial (lane)
    # axis.  x is f32, so the mean carries no input-quantization error; only
    # the two matmuls below run with bf16 operands (f32 MXU accumulation).
    # TODO(synk): on v7x the pool could be moved onto the idle MXU via an
    # einsum with a ones-vector; kept on VPU/XLU here (neutral on v5e/v6e).
    pooled = jnp.sum(x_ref[...], axis=-1) * inv_hw                        # (TB, C) f32

    # Linear 1 + bias + ReLU.
    h = jnp.dot(pooled.astype(w1_ref.dtype), w1_ref[...],
                preferred_element_type=jnp.float32) + b1_ref[...]         # (TB, Cp)
    h = jnp.maximum(h, 0.0)

    # Linear 2 + bias.
    out = jnp.dot(h.astype(w2_ref.dtype), w2_ref[...],
                  preferred_element_type=jnp.float32) + b2_ref[...]       # (TB, OutP)
    o_ref[...] = out.astype(o_ref.dtype)


def mlp_forward(x, w1, b1, w2, b2, *, compute_dtype=jnp.bfloat16):
    """x: (B, C, H, W) NCHW float32.
    w1: (in, in)   (PyTorch nn.Linear layout: (out_features, in_features))
    b1: (in,)
    w2: (out, in)
    b2: (out,)
    Returns (B, out) float32.
    """
    B, C, H, W = x.shape
    HW = H * W
    out_dim = w2.shape[0]

    # Lane-dense padded sizes for the small weight/activation matrices only.
    Cp = _round_up(C, 128)
    OutP = _round_up(out_dim, 128)

    # x: free reshape only (contiguous merge of H,W) — no transpose/pad/cast.
    x2 = x.reshape(B, C, HW)

    # Small parameters: transpose to (in, out), zero-pad output dims to 128
    # multiples, cast to bf16.  Padded rows/cols are zero so they contribute
    # nothing through the matmuls (ReLU(0)=0), and the padded output columns
    # are sliced off below.
    w1t = jnp.pad(w1.T, ((0, 0), (0, Cp - C))).astype(compute_dtype)                # (C, Cp)
    b1r = jnp.pad(b1, (0, Cp - C)).reshape(1, Cp).astype(jnp.float32)               # (1, Cp)
    w2t = jnp.pad(w2.T, ((0, Cp - C), (0, OutP - out_dim))).astype(compute_dtype)   # (Cp, OutP)
    b2r = jnp.pad(b2, (0, OutP - out_dim)).reshape(1, OutP).astype(jnp.float32)     # (1, OutP)

    # ---- VMEM-derived batch tile size -------------------------------------
    vmem_cap = _vmem_capacity_bytes()
    x_row_bytes = C * HW * 4                      # f32 stream, true (unpadded) C
    out_row_bytes = OutP * 4
    param_bytes = (C * Cp + Cp * OutP) * 2 + (Cp + OutP) * 4
    budget = int(0.8 * vmem_cap)                  # headroom for compiler scratch
    # Conservative footprint: 3 x-buffers, 2 out-buffers, 2 param copies.
    denom = 3 * x_row_bytes + 2 * out_row_bytes
    tb_cap = max(1, (budget - 2 * param_bytes - (2 << 20)) // denom)
    TB = min(256, tb_cap)
    if B <= TB:
        TB = B                                    # single tile: full-dim block (exempt from 8-rule)
    else:
        TB = max(8, (TB // 8) * 8)                # tiled: sublane-aligned output blocks

    grid = ((B + TB - 1) // TB,)                  # cdiv grid; no batch zero-pad pass
    need = 3 * TB * x_row_bytes + 2 * TB * out_row_bytes + 2 * param_bytes + (2 << 20)
    vmem_limit = int(min(vmem_cap, max(need + (4 << 20), 32 << 20)))

    kernel = functools.partial(mlp_kernel, inv_hw=float(1.0 / HW))
    out_shape = jax.ShapeDtypeStruct((B, OutP), jnp.float32)

    def call(use_pipeline_mode):
        if use_pipeline_mode:
            pm_x = dict(pipeline_mode=pl.Buffered(3))      # deeper pipeline on the x stream
            pm_const = dict(pipeline_mode=pl.Buffered(1))  # single resident copy of params
        else:
            pm_x = {}
            pm_const = {}
        in_specs = [
            # x: per-step batch tile; C and HW are full dims -> no (8,128) padding needed.
            pl.BlockSpec((TB, C, HW), lambda i: (i, 0, 0), **pm_x),
            # Parameters: constant index_map -> DMA'd once, resident across grid steps.
            pl.BlockSpec((C, Cp), lambda i: (0, 0), **pm_const),
            pl.BlockSpec((1, Cp), lambda i: (0, 0), **pm_const),
            pl.BlockSpec((Cp, OutP), lambda i: (0, 0), **pm_const),
            pl.BlockSpec((1, OutP), lambda i: (0, 0), **pm_const),
        ]
        return pl.pallas_call(
            kernel,
            out_shape=out_shape,
            grid=grid,
            in_specs=in_specs,
            out_specs=pl.BlockSpec((TB, OutP), lambda i: (i, 0)),
            compiler_params=pltpu.CompilerParams(
                dimension_semantics=("parallel",),   # batch tiles shard across TCs (v7x)
                vmem_limit_bytes=vmem_limit,
            ),
        )(x2, w1t, b1r, w2t, b2r)

    try:
        out_padded = call(True)
    except Exception:
        # pipeline_mode unsupported on this jax/backend: fall back to default
        # double-buffered specs (same semantics, slightly more VMEM).
        out_padded = call(False)

    return out_padded[:, :out_dim]


if __name__ == "__main__":
    # Small shapes consistent with the module: is_global=True, so in_dim = C.
    B, C, H, W = 2, 32, 8, 8
    out_dim = 16

    key = jax.random.PRNGKey(0)
    kx, kw1, kb1, kw2, kb2 = jax.random.split(key, 5)

    x = jax.random.normal(kx, (B, C, H, W), dtype=jnp.float32)
    # Deterministic synthetic parameters (shapes match nn.Linear(in,in), nn.Linear(in,out)).
    w1 = jax.random.normal(kw1, (C, C), dtype=jnp.float32) * 0.05
    b1 = jax.random.normal(kb1, (C,), dtype=jnp.float32) * 0.05
    w2 = jax.random.normal(kw2, (out_dim, C), dtype=jnp.float32) * 0.05
    b2 = jax.random.normal(kb2, (out_dim,), dtype=jnp.float32) * 0.05

    out = mlp_forward(x, w1, b1, w2, b2)
    out = jax.block_until_ready(out)

    # Reference in plain JAX (same math as the PyTorch forward), full f32.
    pooled_ref = jnp.mean(x, axis=(2, 3))
    h_ref = jnp.maximum(pooled_ref @ w1.T + b1, 0.0)
    out_ref = h_ref @ w2.T + b2

    assert out.shape == (B, out_dim)
    # Pool is exact f32 now; only the matmuls use bf16 operands (f32 accumulation).
    assert jnp.allclose(out, out_ref, atol=2e-2, rtol=2e-2), (
        float(jnp.max(jnp.abs(out - out_ref))))

    print("KERNEL_OK")
</pallas_src>

<mosaic_0001>
module attributes {stable_mosaic.version = 11 : i64} {
  func.func @mlp_kernel(%arg0: i32, %arg1: memref<2x32x64xf32, #tpu.memory_space<vmem>>, %arg2: memref<32x128xbf16, #tpu.memory_space<vmem>>, %arg3: memref<1x128xf32, #tpu.memory_space<vmem>>, %arg4: memref<128x128xbf16, #tpu.memory_space<vmem>>, %arg5: memref<1x128xf32, #tpu.memory_space<vmem>>, %arg6: memref<2x128xf32, #tpu.memory_space<vmem>>) attributes {dimension_semantics = [#tpu.dimension_semantics<parallel>], iteration_bounds = array<i64: 1>, scalar_prefetch = 0 : i64, scratch_operands = 0 : i64, tpu.core_type = #tpu.core_type<tc>, window_params = [{transform_indices = @transform_0, window_bounds = array<i64: 2, 32, 64>}, {pipeline_mode = #tpu.pipeline_mode<synchronous>, transform_indices = @transform_1, window_bounds = array<i64: 32, 128>}, {pipeline_mode = #tpu.pipeline_mode<synchronous>, transform_indices = @transform_2, window_bounds = array<i64: 1, 128>}, {pipeline_mode = #tpu.pipeline_mode<synchronous>, transform_indices = @transform_3, window_bounds = array<i64: 128, 128>}, {pipeline_mode = #tpu.pipeline_mode<synchronous>, transform_indices = @transform_4, window_bounds = array<i64: 1, 128>}, {transform_indices = @transform_5, window_bounds = array<i64: 2, 128>}]} {
    %c0 = arith.constant 0 : index
    %c0_0 = arith.constant 0 : index
    %c0_1 = arith.constant 0 : index
    %0 = vector.load %arg1[%c0, %c0_0, %c0_1] : memref<2x32x64xf32, #tpu.memory_space<vmem>>, vector<2x32x64xf32>
    %cst = arith.constant dense<0.000000e+00> : vector<2x32xf32>
    %1 = vector.multi_reduction <add>, %0, %cst [2] : vector<2x32x64xf32> to vector<2x32xf32>
    %cst_2 = arith.constant 1.562500e-02 : f32
    %2 = vector.broadcast %cst_2 : f32 to vector<2x32xf32>
    %3 = arith.mulf %1, %2 : vector<2x32xf32>
    %4 = arith.truncf %3 : vector<2x32xf32> to vector<2x32xbf16>
    %c0_3 = arith.constant 0 : index
    %c0_4 = arith.constant 0 : index
    %5 = vector.load %arg2[%c0_3, %c0_4] : memref<32x128xbf16, #tpu.memory_space<vmem>>, vector<32x128xbf16>
    %cst_5 = arith.constant dense<0.000000e+00> : vector<2x128xf32>
    %6 = tpu.matmul %4, %5, %cst_5 {dimension_numbers = #tpu.dot_dimension_numbers<[1], [0], [0], [1], [0, 0, 1, 1], [], []>} : vector<2x32xbf16>, vector<32x128xbf16>, vector<2x128xf32> -> vector<2x128xf32>
    %c0_6 = arith.constant 0 : index
    %c0_7 = arith.constant 0 : index
    %7 = vector.load %arg3[%c0_6, %c0_7] : memref<1x128xf32, #tpu.memory_space<vmem>>, vector<1x128xf32>
    %8 = vector.broadcast %7 : vector<1x128xf32> to vector<2x128xf32>
    %9 = arith.addf %6, %8 : vector<2x128xf32>
    %cst_8 = arith.constant 0.000000e+00 : f32
    %10 = vector.broadcast %cst_8 : f32 to vector<2x128xf32>
    %11 = arith.maximumf %9, %10 : vector<2x128xf32>
    %12 = arith.truncf %11 : vector<2x128xf32> to vector<2x128xbf16>
    %c0_9 = arith.constant 0 : index
    %c0_10 = arith.constant 0 : index
    %13 = vector.load %arg4[%c0_9, %c0_10] : memref<128x128xbf16, #tpu.memory_space<vmem>>, vector<128x128xbf16>
    %cst_11 = arith.constant dense<0.000000e+00> : vector<2x128xf32>
    %14 = tpu.matmul %12, %13, %cst_11 {dimension_numbers = #tpu.dot_dimension_numbers<[1], [0], [0], [1], [0, 0, 1, 1], [], []>} : vector<2x128xbf16>, vector<128x128xbf16>, vector<2x128xf32> -> vector<2x128xf32>
    %c0_12 = arith.constant 0 : index
    %c0_13 = arith.constant 0 : index
    %15 = vector.load %arg5[%c0_12, %c0_13] : memref<1x128xf32, #tpu.memory_space<vmem>>, vector<1x128xf32>
    %16 = vector.broadcast %15 : vector<1x128xf32> to vector<2x128xf32>
    %17 = arith.addf %14, %16 : vector<2x128xf32>
    %c0_14 = arith.constant 0 : index
    %c0_15 = arith.constant 0 : index
    %18 = vector.load %arg6[%c0_14, %c0_15] : memref<2x128xf32, #tpu.memory_space<vmem>>, vector<2x128xf32>
    tpu.vector_store %arg6[%c0_14, %c0_15], %17 {strides = array<i32>} : memref<2x128xf32, #tpu.memory_space<vmem>>, vector<2x128xf32>,
    return
  }
  func.func @transform_0(%arg0: i32) -> (i32, i32, i32) {
    %c0_i32 = arith.constant 0 : i32
    %c0_i32_0 = arith.constant 0 : i32
    %c0_i32_1 = arith.constant 0 : i32
    return %arg0, %c0_i32, %c0_i32_0 : i32, i32, i32
  }
  func.func @transform_1(%arg0: i32) -> (i32, i32) {
    %c0_i32 = arith.constant 0 : i32
    %c0_i32_0 = arith.constant 0 : i32
    %c0_i32_1 = arith.constant 0 : i32
    return %c0_i32, %c0_i32_0 : i32, i32
  }
  func.func @transform_2(%arg0: i32) -> (i32, i32) {
    %c0_i32 = arith.constant 0 : i32
    %c0_i32_0 = arith.constant 0 : i32
    %c0_i32_1 = arith.constant 0 : i32
    return %c0_i32, %c0_i32_0 : i32, i32
  }
  func.func @transform_3(%arg0: i32) -> (i32, i32) {
    %c0_i32 = arith.constant 0 : i32
    %c0_i32_0 = arith.constant 0 : i32
    %c0_i32_1 = arith.constant 0 : i32
    return %c0_i32, %c0_i32_0 : i32, i32
  }
  func.func @transform_4(%arg0: i32) -> (i32, i32) {
    %c0_i32 = arith.constant 0 : i32
    %c0_i32_0 = arith.constant 0 : i32
    %c0_i32_1 = arith.constant 0 : i32
    return %c0_i32, %c0_i32_0 : i32, i32
  }
  func.func @transform_5(%arg0: i32) -> (i32, i32) {
    %c0_i32 = arith.constant 0 : i32
    %c0_i32_0 = arith.constant 0 : i32
    return %arg0, %c0_i32 : i32, i32
  }
}

</mosaic_0001>

<llo_original>
// kernel: tpu_custom_call.1
$region0: #{tpu_custom_call.1}
  #allocation0 [shape = 'u32[]', space=smem, size = 0x4, offset = 0x4, fixed_abs, tag = 'smem constant byte address 0x4 - core index']
  #allocation1 [shape = 'u32[72,128]{1,0:T(1,128)}', space=vmem, size = 0x9000, scoped, tag = 'internal scratch']
  %s0 = inlined_call_operand.hbm [shape: f32[2,32,64], index: 0, kind: input, shape index: {}]
  %s1 = inlined_call_operand.hbm [shape: bf16[32,128], index: 1, kind: input, shape index: {}]
  %s2 = inlined_call_operand.vmem [shape: f32[1,128], index: 2, kind: input, shape index: {}]
  %s3 = inlined_call_operand.hbm [shape: bf16[128,128], index: 3, kind: input, shape index: {}]
  %s4 = inlined_call_operand.vmem [shape: f32[1,128], index: 4, kind: input, shape index: {}]
  %s5 = inlined_call_operand.hbm [shape: f32[2,128], index: 5, kind: output, shape index: {}]
  %s6 = sld [smem:[#allocation0]]
  $region42: #{tpu_custom_call.1} parent=0
    _
  %s8 = ssub.s32 1, %s6
  %s9 = scalar_select 0, %s8, %s6
  $region1: #{tpu_custom_call.1} parent=0
    #allocation2 [shape = 'u8[32768]{0}', space=vmem, size = 0x8000, scoped, tag = 'input window, operand 0, single buffered']
    #allocation3 [shape = 's32[1]{0}', space=sflag, size = 0x4, scoped, tag = 'scoped memory for tpu_custom_call.1']
    #allocation4 [shape = 's32[1]{0}', space=sflag, size = 0x4, scoped, tag = 'scoped memory for tpu_custom_call.1']
    #allocation5 [shape = 'u8[8192]{0}', space=vmem, size = 0x2000, scoped, tag = 'input window, operand 1, single buffered']
    #allocation6 [shape = 's32[1]{0}', space=sflag, size = 0x4, scoped, tag = 'scoped memory for tpu_custom_call.1']
    #allocation7 [shape = 'u8[32768]{0}', space=vmem, size = 0x8000, scoped, tag = 'input window, operand 3, single buffered']
    #allocation8 [shape = 'u8[1024]{0}', space=vmem, size = 0x400, scoped, tag = 'output window, operand 0, single buffered']
    %10 = vsyncpa [#allocation3], 0
    %11 = vsyncpa [#allocation6], 0
    %12 = vsyncpa [#allocation4], 0
    // Predicated region
    $region2: #{tpu_custom_call.1} parent=1 // pred_check
      _
    $region3: #{tpu_custom_call.1} parent=1 // pred_check_branch
      %14 = sbr.rel (0) target = $region5
    $region4: #{tpu_custom_call.1} parent=1 // pred_region
      %16 = vsyncadd [#allocation3], 0
      %s17 = sshll.u32 %s0, 4
      %s18 = int_to_ptr.hbm [resolvable:$true] %s17
      %s19 = sshll.u32 [#allocation2], 4
      %s20 = int_to_ptr.vmem [resolvable:$true] %s19
      %25 = dma.hbm_to_vmem [thread:$0]  %s18, 1024, %s20, [#allocation3], 128, 128, 8
    $region5: #{tpu_custom_call.1} parent=1 // pred_fallthru
      _
    // Predicated region
    $region6: #{tpu_custom_call.1} parent=1 // pred_check
      _
    $region7: #{tpu_custom_call.1} parent=1 // pred_check_branch
      %27 = sbr.rel (0) target = $region9
    $region8: #{tpu_custom_call.1} parent=1 // pred_region
      %29 = vsyncadd [#allocation6], 0
      %s30 = sshll.u32 %s1, 4
      %s31 = int_to_ptr.hbm [resolvable:$true] %s30
      %s32 = sshll.u32 [#allocation5], 4
      %s33 = int_to_ptr.vmem [resolvable:$true] %s32
      %38 = dma.hbm_to_vmem [thread:$0]  %s31, 256, %s33, [#allocation6], 64, 64, 4
    $region9: #{tpu_custom_call.1} parent=1 // pred_fallthru
      _
    // Predicated region
    $region10: #{tpu_custom_call.1} parent=1 // pred_check
      _
    $region11: #{tpu_custom_call.1} parent=1 // pred_check_branch
      %40 = sbr.rel (0) target = $region13
    $region12: #{tpu_custom_call.1} parent=1 // pred_region
      _
    $region13: #{tpu_custom_call.1} parent=1 // pred_fallthru
      _
    // Predicated region
    $region14: #{tpu_custom_call.1} parent=1 // pred_check
      _
    $region15: #{tpu_custom_call.1} parent=1 // pred_check_branch
      %42 = sbr.rel (0) target = $region17
    $region16: #{tpu_custom_call.1} parent=1 // pred_region
      %44 = vsyncadd [#allocation6], 0
      %s45 = sshll.u32 %s3, 4
      %s46 = int_to_ptr.hbm [resolvable:$true] %s45
      %s47 = sshll.u32 [#allocation7], 4
      %s48 = int_to_ptr.vmem [resolvable:$true] %s47
      %53 = dma.hbm_to_vmem [thread:$0]  %s46, 1024, %s48, [#allocation6], 64, 64, 4
    $region17: #{tpu_custom_call.1} parent=1 // pred_fallthru
      _
    // Predicated region
    $region18: #{tpu_custom_call.1} parent=1 // pred_check
      _
    $region19: #{tpu_custom_call.1} parent=1 // pred_check_branch
      %55 = sbr.rel (0) target = $region21
    $region20: #{tpu_custom_call.1} parent=1 // pred_region
      _
    $region21: #{tpu_custom_call.1} parent=1 // pred_fallthru
      _
    // Predicated region
    $region22: #{tpu_custom_call.1} parent=1 // pred_check
      _
    $region23: #{tpu_custom_call.1} parent=1 // pred_check_branch
      %57 = sbr.rel (0) target = $region25
    $region24: #{tpu_custom_call.1} parent=1 // pred_region
      %59 = dma.done [#allocation3], 1024
    $region25: #{tpu_custom_call.1} parent=1 // pred_fallthru
      _
    // Predicated region
    $region26: #{tpu_custom_call.1} parent=1 // pred_check
      _
    $region27: #{tpu_custom_call.1} parent=1 // pred_check_branch
      %61 = sbr.rel (0) target = $region29
    $region28: #{tpu_custom_call.1} parent=1 // pred_region
      %63 = dma.done [#allocation6], 256
    $region29: #{tpu_custom_call.1} parent=1 // pred_fallthru
      _
    // Predicated region
    $region30: #{tpu_custom_call.1} parent=1 // pred_check
      _
    $region31: #{tpu_custom_call.1} parent=1 // pred_check_branch
      %65 = sbr.rel (0) target = $region33
    $region32: #{tpu_custom_call.1} parent=1 // pred_region
      %67 = dma.done [#allocation6], 1024
    $region33: #{tpu_custom_call.1} parent=1 // pred_fallthru
      _
    %v69 = vld [vmem:[#allocation2] sm:$0xff]
    %v70 = vld [vmem:[#allocation2 + $0x8] sm:$0xff]
    %v71 = vld [vmem:[#allocation2 + $0x10] sm:$0xff]
    %v72 = vld [vmem:[#allocation2 + $0x18] sm:$0xff]
    %v73 = vld [vmem:[#allocation2 + $0x20] sm:$0xff]
    %v74 = vld [vmem:[#allocation2 + $0x28] sm:$0xff]
    %v75 = vld [vmem:[#allocation2 + $0x30] sm:$0xff]
    %v76 = vld [vmem:[#allocation2 + $0x38] sm:$0xff]
    %vm77 = vcmask 523264
    %v78 = vsel %vm77, %v69, 0.0
    %79 = vadd.xlane.f32.xlu0 %v78
    %v80 = vpop.xlane.xlu0 %79
    %v81 = vsel %vm77, %v70, 0.0
    %82 = vadd.xlane.f32.xlu0 %v81
    %v83 = vpop.xlane.xlu0 %82
    %v84 = vsel %vm77, %v71, 0.0
    %85 = vadd.xlane.f32.xlu0 %v84
    %v86 = vpop.xlane.xlu0 %85
    %v87 = vsel %vm77, %v72, 0.0
    %88 = vadd.xlane.f32.xlu0 %v87
    %v89 = vpop.xlane.xlu0 %88
    %v90 = vsel %vm77, %v73, 0.0
    %91 = vadd.xlane.f32.xlu0 %v90
    %v92 = vpop.xlane.xlu0 %91
    %v93 = vsel %vm77, %v74, 0.0
    %94 = vadd.xlane.f32.xlu0 %v93
    %v95 = vpop.xlane.xlu0 %94
    %v96 = vsel %vm77, %v75, 0.0
    %97 = vadd.xlane.f32.xlu0 %v96
    %v98 = vpop.xlane.xlu0 %97
    %v99 = vsel %vm77, %v76, 0.0
    %100 = vadd.xlane.f32.xlu0 %v99
    %v101 = vpop.xlane.xlu0 %100
    %v102 = vmul.f32 %v80, 0.015625
    %v103 = vmul.f32 %v83, 0.015625
    %v104 = vmul.f32 %v86, 0.015625
    %v105 = vmul.f32 %v89, 0.015625
    %v106 = vmul.f32 %v92, 0.015625
    %v107 = vmul.f32 %v95, 0.015625
    %v108 = vmul.f32 %v98, 0.015625
    %v109 = vmul.f32 %v101, 0.015625
    %v110 = vpack.c.bf16 %v103, %v102
    %v111 = vpack.c.bf16 %v105, %v104
    %v112 = vpack.c.bf16 %v107, %v106
    %v113 = vpack.c.bf16 %v109, %v108
    %v114 = vld [vmem:[#allocation5] sm:$0xf]
    %v115 = vld [vmem:[#allocation5 + $0x4] sm:$0xf]
    %v116 = vld [vmem:[#allocation5 + $0x8] sm:$0xf]
    %v117 = vld [vmem:[#allocation5 + $0xc] sm:$0xf]
    %v118 = vld [vmem:[%s2] sm:$0x1]
    %v120 = vperm.slane %v118, 0
    %v126 = vunpack.c.l.b16 %v110
    %v127 = vunpack.c.h.b16 %v110
    %v128 = vunpack.c.l.b16 %v111
    %v129 = vunpack.c.h.b16 %v111
    %v130 = vunpack.c.l.b16 %v112
    %v131 = vunpack.c.h.b16 %v112
    %v132 = vunpack.c.l.b16 %v113
    %v133 = vunpack.c.h.b16 %v113
    %v134 = vlaneseq
    %v135 = vand.u32 %v134, 127
    %v136 = vperm.slane %v126, %v135
    %v137 = vadd.s32 %v135, 4294967288
    %v138 = vperm.slane %v127, %v137
    %vm139 = vcmask 130112
    %v140 = vsel %vm139, %v138, %v136
    %v141 = vadd.s32 %v135, 4294967280
    %v142 = vperm.slane %v128, %v141
    %vm143 = vcmask 195712
    %v144 = vsel %vm143, %v142, %v140
    %v145 = vadd.s32 %v135, 4294967272
    %v146 = vperm.slane %v129, %v145
    %vm147 = vcmask 261312
    %v148 = vsel %vm147, %v146, %v144
    %v149 = vperm.slane %v130, %v135
    %v150 = vperm.slane %v131, %v137
    %v151 = vsel %vm139, %v150, %v149
    %v152 = vperm.slane %v132, %v141
    %v153 = vsel %vm143, %v152, %v151
    %v154 = vperm.slane %v133, %v145
    %v155 = vsel %vm147, %v154, %v153
    %vm156 = vcmask 1041409
    %v157 = vsel %vm156, %v155, %v148
    %v158 = vpack.c.b16 %v157, %v157
    %v163 = vunpack.c.l.b16 %v114
    %v164 = vunpack.c.l.b16 %v115
    %v165 = vunpack.c.l.b16 %v116
    %v166 = vunpack.c.l.b16 %v117
    %v167 = vpack.c.b16 %v164, %v163
    %v168 = vpack.c.b16 %v166, %v165
    %vm171 = vcmask 261120
    %v173 = vsel %vm171, %v158, 0
    %175 = vmatpush.bf16.msra.mxu0 0
    %176 = vmatpush.bf16.msra.mxu0 0
    %177 = vmatpush.bf16.msra.mxu0 0
    %178 = vmatpush.bf16.msra.mxu0 0
    %179 = vmatpush.bf16.msra.mxu0 0
    %180 = vmatpush.bf16.msra.mxu0 0
    %181 = vmatpush.bf16.msra.mxu0 %v168
    %182 = vmatpush.bf16.msra.mxu0 %v167
    %183 = vmatmul.bf16.gmra.mxu0 %v173
    %v184 = vpop.f32.mrf.mxu0
    %v185 = vadd.f32 %v120, %v184
    %v186 = vpop.f32.mrf.mxu0
    %187 = vdwg.mxu0
    %v188 = vmax.f32 %v185, 0.0
    %v189 = vpack.c.bf16 %v188, %v188
    %v190 = vld [vmem:[#allocation7] sm:$0xf]
    %v191 = vld [vmem:[#allocation7 + $0x4] sm:$0xf]
    %v192 = vld [vmem:[#allocation7 + $0x8] sm:$0xf]
    %v193 = vld [vmem:[#allocation7 + $0xc] sm:$0xf]
    %v194 = vld [vmem:[#allocation7 + $0x10] sm:$0xf]
    %v195 = vld [vmem:[#allocation7 + $0x14] sm:$0xf]
    %v196 = vld [vmem:[#allocation7 + $0x18] sm:$0xf]
    %v197 = vld [vmem:[#allocation7 + $0x1c] sm:$0xf]
    %v198 = vld [vmem:[#allocation7 + $0x20] sm:$0xf]
    %v199 = vld [vmem:[#allocation7 + $0x24] sm:$0xf]
    %v200 = vld [vmem:[#allocation7 + $0x28] sm:$0xf]
    %v201 = vld [vmem:[#allocation7 + $0x2c] sm:$0xf]
    %v202 = vld [vmem:[#allocation7 + $0x30] sm:$0xf]
    %v203 = vld [vmem:[#allocation7 + $0x34] sm:$0xf]
    %v204 = vld [vmem:[#allocation7 + $0x38] sm:$0xf]
    %v205 = vld [vmem:[#allocation7 + $0x3c] sm:$0xf]
    %v206 = vld [vmem:[%s4] sm:$0x1]
    %v208 = vperm.slane %v206, 0
    %v226 = vunpack.c.l.b16 %v190
    %v227 = vunpack.c.l.b16 %v191
    %v228 = vunpack.c.l.b16 %v192
    %v229 = vunpack.c.l.b16 %v193
    %v230 = vunpack.c.l.b16 %v194
    %v231 = vunpack.c.l.b16 %v195
    %v232 = vunpack.c.l.b16 %v196
    %v233 = vunpack.c.l.b16 %v197
    %v234 = vunpack.c.l.b16 %v198
    %v235 = vunpack.c.l.b16 %v199
    %v236 = vunpack.c.l.b16 %v200
    %v237 = vunpack.c.l.b16 %v201
    %v238 = vunpack.c.l.b16 %v202
    %v239 = vunpack.c.l.b16 %v203
    %v240 = vunpack.c.l.b16 %v204
    %v241 = vunpack.c.l.b16 %v205
    %v242 = vpack.c.b16 %v227, %v226
    %v243 = vpack.c.b16 %v229, %v228
    %v244 = vpack.c.b16 %v231, %v230
    %v245 = vpack.c.b16 %v233, %v232
    %v246 = vpack.c.b16 %v235, %v234
    %v247 = vpack.c.b16 %v237, %v236
    %v248 = vpack.c.b16 %v239, %v238
    %v249 = vpack.c.b16 %v241, %v240
    %258 = vmatpush.bf16.msra.mxu0 %v249
    %259 = vmatpush.bf16.msra.mxu0 %v248
    %260 = vmatpush.bf16.msra.mxu0 %v247
    %261 = vmatpush.bf16.msra.mxu0 %v246
    %262 = vmatpush.bf16.msra.mxu0 %v245
    %263 = vmatpush.bf16.msra.mxu0 %v244
    %264 = vmatpush.bf16.msra.mxu0 %v243
    %265 = vmatpush.bf16.msra.mxu0 %v242
    %266 = vmatmul.bf16.gmra.mxu0 %v189
    %v267 = vpop.f32.mrf.mxu0
    %v268 = vadd.f32 %v208, %v267
    %v269 = vpop.f32.mrf.mxu0
    %270 = vdwg.mxu0
    %271 = vst [vmem:[#allocation8] sm:$0x3] %v268
    // Predicated region
    $region34: #{tpu_custom_call.1} parent=1 // pred_check
      _
    $region35: #{tpu_custom_call.1} parent=1 // pred_check_branch
      %273 = sbr.rel (0) target = $region37
    $region36: #{tpu_custom_call.1} parent=1 // pred_region
      %275 = vsyncadd [#allocation4], 0
      %s277 = sshll.u32 [#allocation8], 4
      %s278 = int_to_ptr.vmem [resolvable:$true] %s277
      %s279 = sshll.u32 %s5, 4
      %s280 = int_to_ptr.hbm [resolvable:$true] %s279
      %282 = dma.vmem_to_hbm [thread:$0]  %s278, 32, %s280, [#allocation4]
    $region37: #{tpu_custom_call.1} parent=1 // pred_fallthru
      _
    // Predicated region
    $region38: #{tpu_custom_call.1} parent=1 // pred_check
      _
    $region39: #{tpu_custom_call.1} parent=1 // pred_check_branch
      %284 = sbr.rel (0) target = $region41
    $region40: #{tpu_custom_call.1} parent=1 // pred_region
      %286 = dma.done [#allocation4], 32
    $region41: #{tpu_custom_call.1} parent=1 // pred_fallthru
      _
    %287 = vsyncpa [#allocation3], 1
    %288 = vsyncpa [#allocation6], 1
    %289 = vsyncpa [#allocation4], 1

</llo_original>
